<compile_context>
chip_gen: v7x
topology: tpu7x:2x2x1
jax: 0.10.0
libtpu: 0.0.40
codegen_flags: <defaults>
</compile_context>

<pallas_src>
import functools

import jax
import jax.numpy as jnp
from jax.experimental import pallas as pl
from jax.experimental.pallas import tpu as pltpu

EPS = 1e-5
MOMENTUM = 0.9  # reference convention: new = momentum*old + (1-momentum)*batch


def _pick_hw_tile(hw: int) -> int:
    """Lane-dense HW tile: multiple of 128, <= 2048 wide, >= 2 grid steps."""
    if hw % 128 != 0:
        return hw  # full-width block (equal to the array dim) is always legal
    for cand in (2048, 1024, 512, 256, 128):
        if hw % cand == 0 and hw // cand >= 2:
            return cand
    return hw


def _bn_stats_kernel(x_ref, params_ref, row_ss_ref, new_stats_ref,
                     sum_ref, ssq_ref, *, n, c, m):
    """Phase 1: single-pass per-channel sum/sumsq accumulation + finalize.

    x_ref        : (n*c, hw_tile) current lane tile of the input slab.
    params_ref   : (c, 4)   columns = [gamma, beta, moving_mean, moving_var].
    row_ss_ref   : (n*c, 2) output, columns = [scale, shift] expanded per row.
    new_stats_ref: (c, 2)   output, columns = [new_moving_mean, new_moving_var].
    sum_ref/ssq_ref: (n*c, 1) VMEM accumulators (persist across grid steps).
    """
    j = pl.program_id(0)

    @pl.when(j == 0)
    def _init():
        sum_ref[...] = jnp.zeros_like(sum_ref)
        ssq_ref[...] = jnp.zeros_like(ssq_ref)

    # One traversal of the tile: accumulate sum(x) and sum(x*x).
    # var = E[x^2] - mean^2 below (acceptable f32 stability tradeoff for BN).
    x = x_ref[...]                                         # (n*c, hw_tile) f32
    sum_ref[...] += jnp.sum(x, axis=1, keepdims=True)      # lane reduce (XLU)
    ssq_ref[...] += jnp.sum(x * x, axis=1, keepdims=True)

    @pl.when(j == pl.num_programs(0) - 1)
    def _finalize():
        s = sum_ref[...]                                   # (n*c, 1)
        ss = ssq_ref[...]
        # Rows are ordered b*c + ch: fold the n row-groups down to channels
        # with static sublane slices (n, c are Python ints at trace time).
        s_c, ss_c = s[0:c, :], ss[0:c, :]
        for g in range(1, n):
            s_c = s_c + s[g * c:(g + 1) * c, :]
            ss_c = ss_c + ss[g * c:(g + 1) * c, :]

        inv_m = 1.0 / m
        mean = s_c * inv_m                                 # (c, 1)
        var = ss_c * inv_m - mean * mean                   # biased (÷M), as in ref
        inv_std = jax.lax.rsqrt(var + EPS)                 # EUP rsqrt

        gamma = params_ref[:, 0:1]                         # (c, 1)
        beta = params_ref[:, 1:2]
        mov_mean = params_ref[:, 2:3]
        mov_var = params_ref[:, 3:4]

        scale = gamma * inv_std                            # (c, 1)
        shift = beta - mean * scale

        # Moving-stat update written only at the finalize step.
        new_stats_ref[:, 0:1] = MOMENTUM * mov_mean + (1.0 - MOMENTUM) * mean
        new_stats_ref[:, 1:2] = MOMENTUM * mov_var + (1.0 - MOMENTUM) * var

        # Expand scale/shift to per-row form so phase 2 is a pure FMA.
        for g in range(n):
            row_ss_ref[g * c:(g + 1) * c, 0:1] = scale
            row_ss_ref[g * c:(g + 1) * c, 1:2] = shift


def _bn_apply_kernel(x_ref, row_ss_ref, y_ref):
    """Phase 2: y = x * scale + shift ((R,1) scale/shift broadcast over lanes)."""
    y_ref[...] = x_ref[...] * row_ss_ref[:, 0:1] + row_ss_ref[:, 1:2]


def batch_norm_2d4d(x_nchw, gamma, beta, moving_mean, moving_var):
    """Pallas batch norm forward (training mode), NCHW input.

    Returns (Y_nchw, new_moving_mean, new_moving_var); moving stats come back
    in the original (1, C, 1, 1) shape.
    """
    n, c, h, w = x_nchw.shape
    hw = h * w
    r = n * c
    hw_tile = _pick_hw_tile(hw)
    num_tiles = hw // hw_tile

    # Contiguous reshape only — no transpose passes over HBM.
    x2d = x_nchw.reshape(r, hw)
    params = jnp.stack(
        [gamma.reshape(c), beta.reshape(c),
         moving_mean.reshape(c), moving_var.reshape(c)], axis=1)  # (c, 4)

    x_spec = pl.BlockSpec((r, hw_tile), lambda j: (0, j))

    # ---- Phase 1: per-channel statistics (reduction grid axis) ----
    row_ss, new_stats = pl.pallas_call(
        functools.partial(_bn_stats_kernel, n=n, c=c, m=float(n * hw)),
        out_shape=(
            jax.ShapeDtypeStruct((r, 2), jnp.float32),
            jax.ShapeDtypeStruct((c, 2), jnp.float32),
        ),
        grid=(num_tiles,),
        in_specs=[x_spec, pl.BlockSpec((c, 4), lambda j: (0, 0))],
        out_specs=(pl.BlockSpec((r, 2), lambda j: (0, 0)),
                   pl.BlockSpec((c, 2), lambda j: (0, 0))),
        scratch_shapes=[pltpu.VMEM((r, 1), jnp.float32),
                        pltpu.VMEM((r, 1), jnp.float32)],
        compiler_params=pltpu.CompilerParams(
            dimension_semantics=("arbitrary",)),
    )(x2d, params)

    # ---- Phase 2: normalize + affine (independent tiles -> "parallel") ----
    y2d = pl.pallas_call(
        _bn_apply_kernel,
        out_shape=jax.ShapeDtypeStruct((r, hw), jnp.float32),
        grid=(num_tiles,),
        in_specs=[x_spec, pl.BlockSpec((r, 2), lambda j: (0, 0))],
        out_specs=x_spec,
        compiler_params=pltpu.CompilerParams(
            dimension_semantics=("parallel",)),
    )(x2d, row_ss)

    return (y2d.reshape(n, c, h, w),
            new_stats[:, 0].reshape(1, c, 1, 1),
            new_stats[:, 1].reshape(1, c, 1, 1))


# TODO(synk): eval-mode branch (normalization by moving stats) is not
# implemented; the PyTorch reference's eval path calls
# torch.sqrt(moving_var, eps), which is itself invalid in the reference.

if __name__ == "__main__":
    key = jax.random.PRNGKey(0)
    N, C, H, W = 2, 4, 16, 16

    x = jax.random.normal(key, (N, C, H, W), dtype=jnp.float32)

    # Deterministic parameter init, matching BatchNorm.__init__ shapes.
    gamma = jnp.ones((1, C, 1, 1), dtype=jnp.float32)
    beta = jnp.zeros((1, C, 1, 1), dtype=jnp.float32)
    moving_mean = jnp.zeros((1, C, 1, 1), dtype=jnp.float32)
    moving_var = jnp.zeros((1, C, 1, 1), dtype=jnp.float32)

    y, new_mm, new_mv = batch_norm_2d4d(x, gamma, beta, moving_mean, moving_var)
    jax.block_until_ready((y, new_mm, new_mv))

    # Pure-JAX reference (same semantics as the torch training branch).
    mean_ref = jnp.mean(x, axis=(0, 2, 3), keepdims=True)
    var_ref = jnp.mean((x - mean_ref) ** 2, axis=(0, 2, 3), keepdims=True)
    y_ref = gamma * (x - mean_ref) / jnp.sqrt(var_ref + EPS) + beta
    mm_ref = MOMENTUM * moving_mean + (1.0 - MOMENTUM) * mean_ref
    mv_ref = MOMENTUM * moving_var + (1.0 - MOMENTUM) * var_ref

    assert jnp.allclose(y, y_ref, atol=1e-5, rtol=1e-5)
    assert jnp.allclose(new_mm, mm_ref, atol=1e-5, rtol=1e-5)
    assert jnp.allclose(new_mv, mv_ref, atol=1e-5, rtol=1e-5)

    print("KERNEL_OK")
</pallas_src>

<mosaic_0001>
module attributes {stable_mosaic.version = 11 : i64} {
  func.func @_bn_stats_kernel(%arg0: i32, %arg1: memref<8x128xf32, #tpu.memory_space<vmem>>, %arg2: memref<4x4xf32, #tpu.memory_space<vmem>>, %arg3: memref<8x2xf32, #tpu.memory_space<vmem>>, %arg4: memref<4x2xf32, #tpu.memory_space<vmem>>, %arg5: memref<8x1xf32, #tpu.memory_space<vmem>>, %arg6: memref<8x1xf32, #tpu.memory_space<vmem>>) attributes {dimension_semantics = [#tpu.dimension_semantics<arbitrary>], iteration_bounds = array<i64: 2>, scalar_prefetch = 0 : i64, scratch_operands = 2 : i64, tpu.core_type = #tpu.core_type<tc>, window_params = [{transform_indices = @transform_0, window_bounds = array<i64: 8, 128>}, {pipeline_mode = #tpu.pipeline_mode<synchronous>, transform_indices = @transform_1, window_bounds = array<i64: 4, 4>}, {pipeline_mode = #tpu.pipeline_mode<synchronous>, transform_indices = @transform_2, window_bounds = array<i64: 8, 2>}, {pipeline_mode = #tpu.pipeline_mode<synchronous>, transform_indices = @transform_3, window_bounds = array<i64: 4, 2>}]} {
    %c0_i32 = arith.constant 0 : i32
    %0 = arith.cmpi eq, %arg0, %c0_i32 : i32
    %1 = arith.extui %0 : i1 to i32
    %c0_i32_0 = arith.constant 0 : i32
    %2 = arith.cmpi ne, %1, %c0_i32_0 : i32
    scf.if %2 {
      %cst_12 = arith.constant 0.000000e+00 : f32
      %18 = vector.broadcast %cst_12 : f32 to vector<8x1xf32>
      %c0_13 = arith.constant 0 : index
      %c0_14 = arith.constant 0 : index
      %19 = vector.load %arg5[%c0_13, %c0_14] : memref<8x1xf32, #tpu.memory_space<vmem>>, vector<8x1xf32>
      tpu.vector_store %arg5[%c0_13, %c0_14], %18 {strides = array<i32>} : memref<8x1xf32, #tpu.memory_space<vmem>>, vector<8x1xf32>,
      %cst_15 = arith.constant 0.000000e+00 : f32
      %20 = vector.broadcast %cst_15 : f32 to vector<8x1xf32>
      %c0_16 = arith.constant 0 : index
      %c0_17 = arith.constant 0 : index
      %21 = vector.load %arg6[%c0_16, %c0_17] : memref<8x1xf32, #tpu.memory_space<vmem>>, vector<8x1xf32>
      tpu.vector_store %arg6[%c0_16, %c0_17], %20 {strides = array<i32>} : memref<8x1xf32, #tpu.memory_space<vmem>>, vector<8x1xf32>,
    } else {
    }
    %c0 = arith.constant 0 : index
    %c0_1 = arith.constant 0 : index
    %3 = vector.load %arg1[%c0, %c0_1] : memref<8x128xf32, #tpu.memory_space<vmem>>, vector<8x128xf32>
    %c0_2 = arith.constant 0 : index
    %c0_3 = arith.constant 0 : index
    %4 = vector.load %arg5[%c0_2, %c0_3] : memref<8x1xf32, #tpu.memory_space<vmem>>, vector<8x1xf32>
    %cst = arith.constant dense<0.000000e+00> : vector<8xf32>
    %5 = vector.multi_reduction <add>, %3, %cst [1] : vector<8x128xf32> to vector<8xf32>
    %6 = vector.shape_cast %5 : vector<8xf32> to vector<8x1xf32>
    %7 = arith.addf %4, %6 : vector<8x1xf32>
    %c0_4 = arith.constant 0 : index
    %c0_5 = arith.constant 0 : index
    %8 = vector.load %arg5[%c0_4, %c0_5] : memref<8x1xf32, #tpu.memory_space<vmem>>, vector<8x1xf32>
    tpu.vector_store %arg5[%c0_4, %c0_5], %7 {strides = array<i32>} : memref<8x1xf32, #tpu.memory_space<vmem>>, vector<8x1xf32>,
    %c0_6 = arith.constant 0 : index
    %c0_7 = arith.constant 0 : index
    %9 = vector.load %arg6[%c0_6, %c0_7] : memref<8x1xf32, #tpu.memory_space<vmem>>, vector<8x1xf32>
    %10 = arith.mulf %3, %3 : vector<8x128xf32>
    %cst_8 = arith.constant dense<0.000000e+00> : vector<8xf32>
    %11 = vector.multi_reduction <add>, %10, %cst_8 [1] : vector<8x128xf32> to vector<8xf32>
    %12 = vector.shape_cast %11 : vector<8xf32> to vector<8x1xf32>
    %13 = arith.addf %9, %12 : vector<8x1xf32>
    %c0_9 = arith.constant 0 : index
    %c0_10 = arith.constant 0 : index
    %14 = vector.load %arg6[%c0_9, %c0_10] : memref<8x1xf32, #tpu.memory_space<vmem>>, vector<8x1xf32>
    tpu.vector_store %arg6[%c0_9, %c0_10], %13 {strides = array<i32>} : memref<8x1xf32, #tpu.memory_space<vmem>>, vector<8x1xf32>,
    %c1_i32 = arith.constant 1 : i32
    %15 = arith.cmpi eq, %arg0, %c1_i32 : i32
    %16 = arith.extui %15 : i1 to i32
    %c0_i32_11 = arith.constant 0 : i32
    %17 = arith.cmpi ne, %16, %c0_i32_11 : i32
    scf.if %17 {
      %c0_12 = arith.constant 0 : index
      %c0_13 = arith.constant 0 : index
      %18 = vector.load %arg5[%c0_12, %c0_13] : memref<8x1xf32, #tpu.memory_space<vmem>>, vector<8x1xf32>
      %c0_14 = arith.constant 0 : index
      %c0_15 = arith.constant 0 : index
      %19 = vector.load %arg6[%c0_14, %c0_15] : memref<8x1xf32, #tpu.memory_space<vmem>>, vector<8x1xf32>
      %20 = vector.extract_strided_slice %18 {offsets = [0, 0], sizes = [4, 1], strides = [1, 1]} : vector<8x1xf32> to vector<4x1xf32>
      %21 = vector.extract_strided_slice %19 {offsets = [0, 0], sizes = [4, 1], strides = [1, 1]} : vector<8x1xf32> to vector<4x1xf32>
      %22 = vector.extract_strided_slice %18 {offsets = [4, 0], sizes = [4, 1], strides = [1, 1]} : vector<8x1xf32> to vector<4x1xf32>
      %23 = arith.addf %20, %22 : vector<4x1xf32>
      %24 = vector.extract_strided_slice %19 {offsets = [4, 0], sizes = [4, 1], strides = [1, 1]} : vector<8x1xf32> to vector<4x1xf32>
      %25 = arith.addf %21, %24 : vector<4x1xf32>
      %cst_16 = arith.constant 0.001953125 : f32
      %26 = vector.broadcast %cst_16 : f32 to vector<4x1xf32>
      %27 = arith.mulf %23, %26 : vector<4x1xf32>
      %cst_17 = arith.constant 0.001953125 : f32
      %28 = vector.broadcast %cst_17 : f32 to vector<4x1xf32>
      %29 = arith.mulf %25, %28 : vector<4x1xf32>
      %30 = arith.mulf %27, %27 : vector<4x1xf32>
      %31 = arith.subf %29, %30 : vector<4x1xf32>
      %cst_18 = arith.constant 9.99999974E-6 : f32
      %32 = vector.broadcast %cst_18 : f32 to vector<4x1xf32>
      %33 = arith.addf %31, %32 : vector<4x1xf32>
      %34 = math.rsqrt %33 : vector<4x1xf32>
      %c0_19 = arith.constant 0 : index
      %c0_20 = arith.constant 0 : index
      %35 = vector.load %arg2[%c0_19, %c0_20] : memref<4x4xf32, #tpu.memory_space<vmem>>, vector<4x1xf32>
      %c0_21 = arith.constant 0 : index
      %c1 = arith.constant 1 : index
      %36 = vector.load %arg2[%c0_21, %c1] : memref<4x4xf32, #tpu.memory_space<vmem>>, vector<4x1xf32>
      %c0_22 = arith.constant 0 : index
      %c2 = arith.constant 2 : index
      %37 = vector.load %arg2[%c0_22, %c2] : memref<4x4xf32, #tpu.memory_space<vmem>>, vector<4x1xf32>
      %c0_23 = arith.constant 0 : index
      %c3 = arith.constant 3 : index
      %38 = vector.load %arg2[%c0_23, %c3] : memref<4x4xf32, #tpu.memory_space<vmem>>, vector<4x1xf32>
      %39 = arith.mulf %35, %34 : vector<4x1xf32>
      %40 = arith.mulf %27, %39 : vector<4x1xf32>
      %41 = arith.subf %36, %40 : vector<4x1xf32>
      %cst_24 = arith.constant 0.899999976 : f32
      %42 = vector.broadcast %cst_24 : f32 to vector<4x1xf32>
      %43 = arith.mulf %42, %37 : vector<4x1xf32>
      %cst_25 = arith.constant 1.000000e-01 : f32
      %44 = vector.broadcast %cst_25 : f32 to vector<4x1xf32>
      %45 = arith.mulf %44, %27 : vector<4x1xf32>
      %46 = arith.addf %43, %45 : vector<4x1xf32>
      %c0_26 = arith.constant 0 : index
      %c0_27 = arith.constant 0 : index
      %47 = vector.load %arg4[%c0_26, %c0_27] : memref<4x2xf32, #tpu.memory_space<vmem>>, vector<4x1xf32>
      tpu.vector_store %arg4[%c0_26, %c0_27], %46 {strides = array<i32>} : memref<4x2xf32, #tpu.memory_space<vmem>>, vector<4x1xf32>,
      %cst_28 = arith.constant 0.899999976 : f32
      %48 = vector.broadcast %cst_28 : f32 to vector<4x1xf32>
      %49 = arith.mulf %48, %38 : vector<4x1xf32>
      %cst_29 = arith.constant 1.000000e-01 : f32
      %50 = vector.broadcast %cst_29 : f32 to vector<4x1xf32>
      %51 = arith.mulf %50, %31 : vector<4x1xf32>
      %52 = arith.addf %49, %51 : vector<4x1xf32>
      %c0_30 = arith.constant 0 : index
      %c1_31 = arith.constant 1 : index
      %53 = vector.load %arg4[%c0_30, %c1_31] : memref<4x2xf32, #tpu.memory_space<vmem>>, vector<4x1xf32>
      tpu.vector_store %arg4[%c0_30, %c1_31], %52 {strides = array<i32>} : memref<4x2xf32, #tpu.memory_space<vmem>>, vector<4x1xf32>,
      %c0_32 = arith.constant 0 : index
      %c0_33 = arith.constant 0 : index
      %54 = vector.load %arg3[%c0_32, %c0_33] : memref<8x2xf32, #tpu.memory_space<vmem>>, vector<4x1xf32>
      tpu.vector_store %arg3[%c0_32, %c0_33], %39 {strides = array<i32>} : memref<8x2xf32, #tpu.memory_space<vmem>>, vector<4x1xf32>,
      %c0_34 = arith.constant 0 : index
      %c1_35 = arith.constant 1 : index
      %55 = vector.load %arg3[%c0_34, %c1_35] : memref<8x2xf32, #tpu.memory_space<vmem>>, vector<4x1xf32>
      tpu.vector_store %arg3[%c0_34, %c1_35], %41 {strides = array<i32>} : memref<8x2xf32, #tpu.memory_space<vmem>>, vector<4x1xf32>,
      %c4 = arith.constant 4 : index
      %c0_36 = arith.constant 0 : index
      %56 = vector.load %arg3[%c4, %c0_36] : memref<8x2xf32, #tpu.memory_space<vmem>>, vector<4x1xf32>
      tpu.vector_store %arg3[%c4, %c0_36], %39 {strides = array<i32>} : memref<8x2xf32, #tpu.memory_space<vmem>>, vector<4x1xf32>,
      %c4_37 = arith.constant 4 : index
      %c1_38 = arith.constant 1 : index
      %57 = vector.load %arg3[%c4_37, %c1_38] : memref<8x2xf32, #tpu.memory_space<vmem>>, vector<4x1xf32>
      tpu.vector_store %arg3[%c4_37, %c1_38], %41 {strides = array<i32>} : memref<8x2xf32, #tpu.memory_space<vmem>>, vector<4x1xf32>,
    } else {
    }
    return
  }
  func.func @transform_0(%arg0: i32) -> (i32, i32) {
    %c0_i32 = arith.constant 0 : i32
    %c0_i32_0 = arith.constant 0 : i32
    return %c0_i32, %arg0 : i32, i32
  }
  func.func @transform_1(%arg0: i32) -> (i32, i32) {
    %c0_i32 = arith.constant 0 : i32
    %c0_i32_0 = arith.constant 0 : i32
    %c0_i32_1 = arith.constant 0 : i32
    return %c0_i32, %c0_i32_0 : i32, i32
  }
  func.func @transform_2(%arg0: i32) -> (i32, i32) {
    %c0_i32 = arith.constant 0 : i32
    %c0_i32_0 = arith.constant 0 : i32
    %c0_i32_1 = arith.constant 0 : i32
    return %c0_i32, %c0_i32_0 : i32, i32
  }
  func.func @transform_3(%arg0: i32) -> (i32, i32) {
    %c0_i32 = arith.constant 0 : i32
    %c0_i32_0 = arith.constant 0 : i32
    %c0_i32_1 = arith.constant 0 : i32
    return %c0_i32, %c0_i32_0 : i32, i32
  }
}

</mosaic_0001>

<llo_original>
// kernel: tpu_custom_call.1
$region0: #{tpu_custom_call.1}
  #allocation0 [shape = 'u32[]', space=smem, size = 0x4, offset = 0x4, fixed_abs, tag = 'smem constant byte address 0x4 - core index']
  #allocation1 [shape = 'u32[144,128]{1,0:T(1,128)}', space=vmem, size = 0x12000, scoped, tag = 'internal scratch']
  #allocation2 [shape = 'f32[8,1]{1,0:T(8,128)}', space=vmem, size = 0x1000, scoped, tag = 'scratch operand']
  #allocation3 [shape = 'f32[8,1]{1,0:T(8,128)}', space=vmem, size = 0x1000, scoped, tag = 'scratch operand']
  %s0 = inlined_call_operand.hbm [shape: f32[8,256], index: 0, kind: input, shape index: {}]
  %s1 = inlined_call_operand.hbm [shape: f32[4,4], index: 1, kind: input, shape index: {}]
  %s2 = inlined_call_operand.vmem [shape: f32[8,2], index: 2, kind: output, shape index: {0}]
  %s3 = inlined_call_operand.vmem [shape: f32[4,2], index: 3, kind: output, shape index: {1}]
  %4 = xla_tuple %s2, %s3
  %s5 = sld [smem:[#allocation0]]
  $region65: #{tpu_custom_call.1} parent=0
    _
  %s7 = ssub.s32 1, %s5
  %s8 = scalar_select 0, %s7, %s5
  $region1: #{tpu_custom_call.1} parent=0
    #allocation4 [shape = 'u8[8192]{0}', space=vmem, size = 0x2000, scoped, tag = 'input window, operand 0']
    #allocation5 [shape = 's32[2]{0}', space=sflag, size = 0x8, scoped, tag = 'scoped memory for tpu_custom_call.1']
    #allocation6 [shape = 'u8[2048]{0}', space=vmem, size = 0x800, scoped, tag = 'input window, operand 1, single buffered']
    #allocation7 [shape = 's32[1]{0}', space=sflag, size = 0x4, scoped, tag = 'scoped memory for tpu_custom_call.1']
    %9 = vsyncpa [#allocation5], 0
    %s10 = scalar_lea.sflag [#allocation5], 1
    %11 = vsyncpa %s10, 0
    %12 = vsyncpa [#allocation7], 0
    loop: start=0, step=1, limit=4
    $region2: #{tpu_custom_call.1} parent=1 // loop_pre_header
      _
    $region3: #{tpu_custom_call.1} parent=1 // loop_header
      %s14 = sphi 0, %s18
      %p15 = scmp.ge.s32.totalorder %s14, 4
      %s24 = sphi 0, %s26
      %s27 = sphi 0, %s24
      %s28 = sphi 0, %s27
      %s44 = sphi 0, %s28
      %s48 = sphi 0, %s48
      %s50 = sphi 0, %s48
      %s51 = sphi 0, %s50
      %s65 = sphi 0, %s51
      %s69 = sphi 0, %s69
      %s71 = sphi 0, %s69
      %s72 = sphi 0, %s71
      %s86 = sphi 0, %s72
      %s90 = sphi 0, %s90
      %s92 = sphi 0, %s90
      %s93 = sphi 0, %s92
      %s107 = sphi 0, %s93
    $region4: #{tpu_custom_call.1} parent=1 // loop_header_branch
      %17 = sbr.rel (%p15) target = $region8
    $region5: #{tpu_custom_call.1} parent=1 // loop_body
      %s19 = ssub.s32 %s14, 1
      %s20 = ssub.s32 %s14, 2
      %s21 = sadd.s32 %s14, 1
      %s22 = ssub.s32 %s14, %s21
      %p23 = scmp.eq.s32.totalorder %s22, 0
      %s25 = sadd.s32 %s24, 1
      %s26 = scalar_select %p23, %s24, %s25
      %p29 = pneg %p23
      %p30 = scmp.eq.s32.totalorder %s14, 1
      %p31 = por %p29, %p30
      %p32 = scmp.ne.s32.totalorder %s24, %s27
      %p33 = scmp.eq.s32.totalorder %s14, 0
      %p34 = por %p32, %p33
      %p35 = scmp.ne.s32.totalorder %s24, %s27
      %p36 = scmp.eq.s32.totalorder %s19, 1
      %p37 = por %p35, %p36
      %p38 = scmp.ne.s32.totalorder %s27, %s28
      %p39 = scmp.eq.s32.totalorder %s19, 0
      %p40 = por %p38, %p39
      %p41 = scmp.ne.s32.totalorder %s27, %s28
      %p42 = scmp.eq.s32.totalorder %s20, 1
      %p43 = por %p41, %p42
      %p45 = scmp.ne.s32.totalorder %s28, %s44
      %p46 = scmp.eq.s32.totalorder %s20, 0
      %p47 = por %p45, %p46
      %s49 = sadd.s32 %s48, 1
      %p52 = scmp.eq.s32.totalorder %s14, 1
      %p53 = scmp.ne.s32.totalorder %s48, %s50
      %p54 = scmp.eq.s32.totalorder %s14, 0
      %p55 = por %p53, %p54
      %p56 = scmp.ne.s32.totalorder %s48, %s50
      %p57 = scmp.eq.s32.totalorder %s19, 1
      %p58 = por %p56, %p57
      %p59 = scmp.ne.s32.totalorder %s50, %s51
      %p60 = scmp.eq.s32.totalorder %s19, 0
      %p61 = por %p59, %p60
      %p62 = scmp.ne.s32.totalorder %s50, %s51
      %p63 = scmp.eq.s32.totalorder %s20, 1
      %p64 = por %p62, %p63
      %p66 = scmp.ne.s32.totalorder %s51, %s65
      %p67 = scmp.eq.s32.totalorder %s20, 0
      %p68 = por %p66, %p67
      %s70 = sadd.s32 %s69, 1
      %p73 = scmp.eq.s32.totalorder %s14, 1
      %p74 = scmp.ne.s32.totalorder %s69, %s71
      %p75 = scmp.eq.s32.totalorder %s14, 0
      %p76 = por %p74, %p75
      %p77 = scmp.ne.s32.totalorder %s69, %s71
      %p78 = scmp.eq.s32.totalorder %s19, 1
      %p79 = por %p77, %p78
      %p80 = scmp.ne.s32.totalorder %s71, %s72
      %p81 = scmp.eq.s32.totalorder %s19, 0
      %p82 = por %p80, %p81
      %p83 = scmp.ne.s32.totalorder %s71, %s72
      %p84 = scmp.eq.s32.totalorder %s20, 1
      %p85 = por %p83, %p84
      %p87 = scmp.ne.s32.totalorder %s72, %s86
      %p88 = scmp.eq.s32.totalorder %s20, 0
      %p89 = por %p87, %p88
      %s91 = sadd.s32 %s90, 1
      %p94 = scmp.eq.s32.totalorder %s14, 1
      %p95 = scmp.ne.s32.totalorder %s90, %s92
      %p96 = scmp.eq.s32.totalorder %s14, 0
      %p97 = por %p95, %p96
      %p98 = scmp.ne.s32.totalorder %s90, %s92
      %p99 = scmp.eq.s32.totalorder %s19, 1
      %p100 = por %p98, %p99
      %p101 = scmp.ne.s32.totalorder %s92, %s93
      %p102 = scmp.eq.s32.totalorder %s19, 0
      %p103 = por %p101, %p102
      %p104 = scmp.ne.s32.totalorder %s92, %s93
      %p105 = scmp.eq.s32.totalorder %s20, 1
      %p106 = por %p104, %p105
      %p108 = scmp.ne.s32.totalorder %s93, %s107
      %p109 = scmp.eq.s32.totalorder %s20, 0
      %p110 = por %p108, %p109
      %p111 = scmp.le.s32.totalorder 1, %s14
      %p112 = scmp.lt.s32.totalorder %s14, 3
      %p113 = pnand %p111, %p112
      %p114 = pneg %p113
      // Predicated region
      $region9: #{tpu_custom_call.1} parent=5 // pred_check
        _
      $region10: #{tpu_custom_call.1} parent=5 // pred_check_branch
        %116 = sbr.rel (%p113) target = $region12
      $region11: #{tpu_custom_call.1} parent=5 // pred_region
        %s117 = ssub.s32 %s14, 1
        // Predicated region
        $region13: #{tpu_custom_call.1} parent=11 // pred_check
          %p118 = pneg %p61
        $region14: #{tpu_custom_call.1} parent=11 // pred_check_branch
          %120 = sbr.rel (%p118) target = $region16
        $region15: #{tpu_custom_call.1} parent=11 // pred_region
          %s122 = ssub.s32 64, 64
          %123 = vsyncadd [#allocation7], %s122
          %s125 = sshll.u32 [#allocation6], 4
          %s126 = int_to_ptr.vmem [resolvable:$true] %s125
          %128 = dma.hbm_to_vmem [thread:$0]  %s1, 64, %s126, [#allocation7]
        $region16: #{tpu_custom_call.1} parent=11 // pred_fallthru
          _
      $region12: #{tpu_custom_call.1} parent=5 // pred_fallthru
        _
      %p129 = scmp.lt.s32.totalorder %s14, 2
      // Predicated region
      $region17: #{tpu_custom_call.1} parent=5 // pred_check
        %p130 = pneg %p129
      $region18: #{tpu_custom_call.1} parent=5 // pred_check_branch
        %132 = sbr.rel (%p130) target = $region20
      $region19: #{tpu_custom_call.1} parent=5 // pred_region
        // Predicated region
        $region21: #{tpu_custom_call.1} parent=19 // pred_check
          %p133 = pneg %p34
        $region22: #{tpu_custom_call.1} parent=19 // pred_check_branch
          %135 = sbr.rel (%p133) target = $region24
        $region23: #{tpu_custom_call.1} parent=19 // pred_region
          %s136 = sand.u32 %s24, 1
          %s137 = scalar_lea.sflag [#allocation5], %s136
          %s138 = sand.u32 %s24, 1
          %s139 = smul.addr %s138, 8
          %s140 = scalar_lea.vmem [#allocation4], %s139
          %s142 = ssub.s32 128, 128
          %143 = vsyncadd %s137, %s142
          %s144 = smul.addr %s14, 128
          %s145 = scalar_lea.hbm %s0, %s144
          %s147 = sshll.u32 %s140, 4
          %s148 = int_to_ptr.vmem [resolvable:$true] %s147
          %150 = dma.hbm_to_vmem [thread:$0]  %s145, 128, %s148, %s137
        $region24: #{tpu_custom_call.1} parent=19 // pred_fallthru
          _
      $region20: #{tpu_custom_call.1} parent=5 // pred_fallthru
        _
      %p151 = scmp.le.s32.totalorder 1, %s14
      %p152 = scmp.lt.s32.totalorder %s14, 3
      %p153 = pnand %p151, %p152
      %p154 = pneg %p153
      // Predicated region
      $region25: #{tpu_custom_call.1} parent=5 // pred_check
        _
      $region26: #{tpu_custom_call.1} parent=5 // pred_check_branch
        %156 = sbr.rel (%p153) target = $region28
      $region27: #{tpu_custom_call.1} parent=5 // pred_region
        %s157 = ssub.s32 %s14, 1
        %s158 = sand.u32 %s27, 1
        %s159 = scalar_lea.sflag [#allocation5], %s158
        %s160 = sand.u32 %s27, 1
        %s161 = smul.addr %s160, 8
        %s162 = scalar_lea.vmem [#allocation4], %s161
        // Predicated region
        $region29: #{tpu_custom_call.1} parent=27 // pred_check
          %p163 = pneg %p40
        $region30: #{tpu_custom_call.1} parent=27 // pred_check_branch
          %165 = sbr.rel (%p163) target = $region32
        $region31: #{tpu_custom_call.1} parent=27 // pred_region
          %166 = dma.done %s159, 128
        $region32: #{tpu_custom_call.1} parent=27 // pred_fallthru
          _
        // Predicated region
        $region33: #{tpu_custom_call.1} parent=27 // pred_check
          %p167 = pneg %p61
        $region34: #{tpu_custom_call.1} parent=27 // pred_check_branch
          %169 = sbr.rel (%p167) target = $region36
        $region35: #{tpu_custom_call.1} parent=27 // pred_region
          %170 = dma.done [#allocation7], 64
        $region36: #{tpu_custom_call.1} parent=27 // pred_fallthru
          _
        %s171 = sand.u32 %s27, 1
        %s172 = scalar_lea.sflag [#allocation5], %s171
        %s173 = sand.u32 %s27, 1
        %s174 = smul.addr %s173, 8
        %s175 = scalar_lea.vmem [#allocation4], %s174
        %p176 = pneg %p40
        %p177 = pneg %p37
        %p178 = pneg %p61
        %p179 = pneg %p58
        %p180 = pneg %p82
        %p181 = pneg %p79
        %p182 = pneg %p103
        %p183 = pneg %p100
        %p184 = scmp.eq.s32.totalorder %s19, 0
        // Predicated region
        $region37: #{tpu_custom_call.1} parent=27 // pred_check
          %p185 = pneg %p184
        $region38: #{tpu_custom_call.1} parent=27 // pred_check_branch
          %187 = sbr.rel (%p185) target = $region40
        $region39: #{tpu_custom_call.1} parent=27 // pred_region
          %vm188 = vcmask 7168
          %189 = vst.msk [vmem:[#allocation2] sm:$0xff] %vm188, 0.0
          %190 = vst.msk [vmem:[#allocation3] sm:$0xff] %vm188, 0.0
        $region40: #{tpu_custom_call.1} parent=27 // pred_fallthru
          _
        %v191 = vld [vmem:[%s162] sm:$0xff]
        %v192 = vld [vmem:[#allocation2] sm:$0xff]
        %193 = vadd.xlane.f32.xlu0 %v191
        %v194 = vpop.xlane.xlu0 %193
        %v195 = vadd.f32 %v192, %v194
        %vm196 = vcmask 7168
        %197 = vst.msk [vmem:[#allocation2] sm:$0xff] %vm196, %v195
        %v198 = vld [vmem:[#allocation3] sm:$0xff]
        %v199 = vmul.f32 %v191, %v191
        %200 = vadd.xlane.f32.xlu0 %v199
        %v201 = vpop.xlane.xlu0 %200
        %v202 = vadd.f32 %v198, %v201
        %203 = vst.msk [vmem:[#allocation3] sm:$0xff] %vm196, %v202
        %p204 = scmp.eq.s32.totalorder %s19, 1
        // Predicated region
        $region41: #{tpu_custom_call.1} parent=27 // pred_check
          %p205 = pneg %p204
        $region42: #{tpu_custom_call.1} parent=27 // pred_check_branch
          %207 = sbr.rel (%p205) target = $region44
        $region43: #{tpu_custom_call.1} parent=27 // pred_region
          %v208 = vld [vmem:[#allocation2] sm:$0xff]
          %v209 = vld [vmem:[#allocation3] sm:$0xff]
          %v211 = vrot.slane %v208, 4
          %v213 = vadd.f32 %v208, %v211
          %v215 = vrot.slane %v209, 4
          %v217 = vadd.f32 %v209, %v215
          %v218 = vmul.f32 %v213, 0.001953125
          %v219 = vmul.f32 %v217, 0.001953125
          %v220 = vmul.f32 %v218, %v218
          %v221 = vsub.f32 %v219, %v220
          %v222 = vadd.f32 %v221, 1e-05
          %v223 = vrsqrt.pop %v222
          %v224 = vld [vmem:[#allocation6] sm:$0xf]
          %v225 = vmul.f32 %v224, %v223
          %v226 = vmul.f32 %v218, %v225
          %228 = vrot.lane.b32.xlu0 %v226, 1
          %v229 = vpop.permute.xlu0 %228
          %v231 = vsub.f32 %v224, %v229
          %v232 = vmul.f32 %v224, 0.9
          %v233 = vmul.f32 %v218, 0.1
          %235 = vrot.lane.b32.xlu0 %v233, 2
          %v236 = vpop.permute.xlu0 %235
          %v238 = vadd.f32 %v232, %v236
          %240 = vrot.lane.b32.xlu0 %v238, 126
          %v241 = vpop.permute.xlu0 %240
          %vm243 = vcmask 3072
          %244 = vst.msk [vmem:[%s3] sm:$0xf] %vm243, %v241
          %v245 = vmul.f32 %v221, 0.1
          %247 = vrot.lane.b32.xlu0 %v245, 3
          %v248 = vpop.permute.xlu0 %247
          %v250 = vadd.f32 %v232, %v248
          %252 = vrot.lane.b32.xlu0 %v250, 126
          %v253 = vpop.permute.xlu0 %252
          %vm255 = vcmask 11272
          %256 = vst.msk [vmem:[%s3] sm:$0xf] %vm255, %v253
          %257 = vst.msk [vmem:[%s2] sm:$0xf] %vm243, %v225
          %258 = vst.msk [vmem:[%s2] sm:$0xf] %vm255, %v231
          %259 = vst.msk [vmem:[%s2 + $0x4] sm:$0xf] %vm243, %v225
          %260 = vst.msk [vmem:[%s2 + $0x4] sm:$0xf] %vm255, %v231
        $region44: #{tpu_custom_call.1} parent=27 // pred_fallthru
          _
        // Predicated region
        $region45: #{tpu_custom_call.1} parent=27 // pred_check
          %p261 = pneg %p79
        $region46: #{tpu_custom_call.1} parent=27 // pred_check_branch
          %263 = sbr.rel (%p261) target = $region48
        $region47: #{tpu_custom_call.1} parent=27 // pred_region
          _
        $region48: #{tpu_custom_call.1} parent=27 // pred_fallthru
          _
        // Predicated region
        $region49: #{tpu_custom_call.1} parent=27 // pred_check
          %p264 = pneg %p100
        $region50: #{tpu_custom_call.1} parent=27 // pred_check_branch
          %266 = sbr.rel (%p264) target = $region52
        $region51: #{tpu_custom_call.1} parent=27 // pred_region
          _
        $region52: #{tpu_custom_call.1} parent=27 // pred_fallthru
          _
        // Predicated region
        $region53: #{tpu_custom_call.1} parent=27 // pred_check
          %p267 = pneg %p79
        $region54: #{tpu_custom_call.1} parent=27 // pred_check_branch
          %269 = sbr.rel (%p267) target = $region56
        $region55: #{tpu_custom_call.1} parent=27 // pred_region
          _
        $region56: #{tpu_custom_call.1} parent=27 // pred_fallthru
          _
        // Predicated region
        $region57: #{tpu_custom_call.1} parent=27 // pred_check
          %p270 = pneg %p100
        $region58: #{tpu_custom_call.1} parent=27 // pred_check_branch
          %272 = sbr.rel (%p270) target = $region60
        $region59: #{tpu_custom_call.1} parent=27 // pred_region
          _
        $region60: #{tpu_custom_call.1} parent=27 // pred_fallthru
          _
      $region28: #{tpu_custom_call.1} parent=5 // pred_fallthru
        _
      %p273 = scmp.le.s32.totalorder 2, %s14
      // Predicated region
      $region61: #{tpu_custom_call.1} parent=5 // pred_check
        %p274 = pneg %p273
      $region62: #{tpu_custom_call.1} parent=5 // pred_check_branch
        %276 = sbr.rel (%p274) target = $region64
      $region63: #{tpu_custom_call.1} parent=5 // pred_region
        %s277 = ssub.s32 %s14, 2
      $region64: #{tpu_custom_call.1} parent=5 // pred_fallthru
        _
    $region6: #{tpu_custom_call.1} parent=1 // loop_footer
      %s18 = sadd.s32 1, %s14
    $region7: #{tpu_custom_call.1} parent=1 // loop_footer_branch
      %13 = sbr.rel target = $region3
    $region8: #{tpu_custom_call.1} parent=1 // loop_exit
      _
    %278 = vsyncpa [#allocation5], 1
    %s279 = scalar_lea.sflag [#allocation5], 1
    %280 = vsyncpa %s279, 1
    %281 = vsyncpa [#allocation7], 1

</llo_original>
